<compile_context>
chip_gen: v7x
topology: tpu7x:2x2x1
jax: 0.10.0
libtpu: 0.0.40
codegen_flags: <defaults>
</compile_context>

<pallas_src>
import math

import jax
import jax.numpy as jnp
from jax import lax
from jax.experimental import pallas as pl
from jax.experimental.pallas import tpu as pltpu


def mlp_kernel(x_ref, w1_ref, b1_ref, w2_ref, b2_ref, o_ref):
    """One batch tile of sigmoid(Linear(U->1)(tanh(Linear(D->U)(x)))).

    x_ref : (TB, D)     f32  natural-layout batch tile (streamed from HBM)
    w1_ref: (U_pad, D)  f32  layer-1 weight, PyTorch (out, in) layout (resident)
    b1_ref: (U_pad, 1)  f32  layer-1 bias column (resident)
    w2_ref: (U_pad, 1)  f32  layer-2 weight column (resident)
    b2_ref: (1, 1)      f32  layer-2 bias scalar (SMEM)
    o_ref : (1, TB)     f32  sigmoid output row (lane-dense)
    """
    # Layer 1 on the MXU, computed transposed (batch on the 128-lane axis):
    #   h^T = W1 @ x^T  -> (U_pad, TB).
    # The x transpose is expressed through the contraction dims (both operands
    # contract on their last axis), so no separate pre-pass over x is needed.
    h = lax.dot_general(
        w1_ref[...], x_ref[...],
        dimension_numbers=(((1,), (1,)), ((), ())),
        preferred_element_type=jnp.float32)                    # (U_pad, TB)
    h = jnp.tanh(h + b1_ref[...])                              # bias bcast over lanes

    # Layer 2 (U -> 1): VPU multiply + sublane (XLU) reduction instead of an
    # N=1 MXU matmul; the result is already lane-dense (1, TB).
    logits = jnp.sum(h * w2_ref[...], axis=0, keepdims=True)   # (1, TB)
    logits = logits + b2_ref[0, 0]                             # SMEM scalar
    o_ref[...] = jax.nn.sigmoid(logits).astype(o_ref.dtype)


def _select_batch_tile(B, D, U_pad, requested):
    """Batch-tile (lanes per grid step) under a conservative VMEM budget."""
    lane_d = pl.cdiv(max(D, 1), 128) * 128   # lane padding of the (TB, D) block
    sub_d = pl.cdiv(max(D, 1), 8) * 8
    tb = max(128, (requested // 128) * 128)

    def vmem_bytes(t):
        x_bufs = 2 * t * lane_d * 4          # double-buffered x tile (lane-padded)
        xt_tmp = sub_d * t * 4               # transposed-x staging inside the dot
        h_tmp = U_pad * t * 4                # layer-1 activations
        out = 2 * t * 4                      # double-buffered (1, TB) output
        return x_bufs + xt_tmp + h_tmp + out

    budget = 24 * 1024 * 1024                # safe on v5e/v6e/v7x
    while tb > 128 and vmem_bytes(tb) > budget:
        tb -= 128
    # Keep >= 2 grid steps when the batch allows it so the "parallel" batch
    # axis can feed both TensorCores on v7x.
    while tb > 128 and pl.cdiv(B, tb) < 2:
        tb = max(128, ((tb // 2) // 128) * 128)
    return tb


def torch_model_forward(x, w1, b1, w2, b2, *, block_b=4096):
    """Forward pass of torch_Model (PyTorch parameter conventions).

    x:  (B, D) float32
    w1: (U, D) float32   -- self.layer.weight
    b1: (U,)   float32   -- self.layer.bias
    w2: (1, U) float32   -- self.output.weight
    b2: (1,)   float32   -- self.output.bias
    returns (B, 1) float32
    """
    B, D = x.shape
    U = w1.shape[0]
    U_pad = pl.cdiv(U, 8) * 8          # f32 sublane granularity only (not 128)

    TB = _select_batch_tile(B, D, U_pad, block_b)
    G = pl.cdiv(B, TB)

    # Only the tiny parameters get re-laid-out host-side; x is consumed
    # directly (no transpose / pad / cast pre-pass, no extra HBM round trip).
    # Zero padding of the extra U rows is mathematically inert.
    w1p = jnp.zeros((U_pad, D), jnp.float32).at[:U, :].set(w1.astype(jnp.float32))
    b1p = jnp.zeros((U_pad, 1), jnp.float32).at[:U, 0].set(b1.astype(jnp.float32))
    w2p = jnp.zeros((U_pad, 1), jnp.float32).at[:U, 0].set(
        w2.reshape(-1).astype(jnp.float32))
    b2s = b2.reshape(1, 1).astype(jnp.float32)

    Bq = G * TB
    cost = pl.CostEstimate(
        flops=2 * U_pad * D * Bq + 3 * U_pad * Bq + 2 * Bq,
        transcendentals=(U_pad + 1) * Bq,
        bytes_accessed=(B * D * 4
                        + (w1p.size + b1p.size + w2p.size + 1) * 4
                        + Bq * 4),
    )

    out = pl.pallas_call(
        mlp_kernel,
        out_shape=jax.ShapeDtypeStruct((G, 1, TB), jnp.float32),
        grid_spec=pltpu.PrefetchScalarGridSpec(
            num_scalar_prefetch=0,
            grid=(G,),
            in_specs=[
                pl.BlockSpec((TB, D), lambda i: (i, 0)),            # x (streamed)
                pl.BlockSpec((U_pad, D), lambda i: (0, 0)),         # W1 (resident)
                pl.BlockSpec((U_pad, 1), lambda i: (0, 0)),         # b1 (resident)
                pl.BlockSpec((U_pad, 1), lambda i: (0, 0)),         # w2 (resident)
                pl.BlockSpec(memory_space=pltpu.MemorySpace.SMEM),  # b2 scalar
            ],
            out_specs=pl.BlockSpec((None, 1, TB), lambda i: (i, 0, 0)),
        ),
        compiler_params=pltpu.CompilerParams(
            # batch tiles are independent -> shardable across the 2 TCs on v7x
            dimension_semantics=("parallel",),
            vmem_limit_bytes=32 * 1024 * 1024,
        ),
        cost_estimate=cost,
    )(x.astype(jnp.float32), w1p, b1p, w2p, b2s)

    # (G, 1, TB) lane-dense slab -> (B, 1), dropping the tail of the last
    # (possibly partial) grid step.
    return out.reshape(G * TB, 1)[:B]


def _xavier_uniform(key, shape):
    # PyTorch nn.init.xavier_uniform_ on an (out, in) weight, gain=1.
    fan_out, fan_in = shape
    bound = math.sqrt(6.0 / (fan_in + fan_out))
    return jax.random.uniform(key, shape, jnp.float32, -bound, bound)


if __name__ == "__main__":
    key = jax.random.PRNGKey(0)
    B, D, U = 200, 16, 32      # batch, input_size, units (small demo shapes)

    k_x, k_w1, k_b1, k_w2, k_b2 = jax.random.split(key, 5)
    x = jax.random.normal(k_x, (B, D), jnp.float32)

    # PyTorch-convention parameters (nn.Linear: weight (out, in), bias (out,)).
    w1 = _xavier_uniform(k_w1, (U, D))
    b1 = jax.random.uniform(k_b1, (U,), jnp.float32,
                            -1.0 / math.sqrt(D), 1.0 / math.sqrt(D))
    w2 = _xavier_uniform(k_w2, (1, U))
    b2 = jax.random.uniform(k_b2, (1,), jnp.float32,
                            -1.0 / math.sqrt(U), 1.0 / math.sqrt(U))

    out = jax.block_until_ready(torch_model_forward(x, w1, b1, w2, b2))
    assert out.shape == (B, 1)

    # Pure-f32 reference == exact PyTorch forward semantics.
    h_ref = jnp.tanh(
        jnp.dot(x, w1.T, precision=lax.Precision.HIGHEST) + b1[None, :])
    ref = jax.nn.sigmoid(
        jnp.dot(h_ref, w2.T, precision=lax.Precision.HIGHEST) + b2[None, :])
    err = float(jnp.max(jnp.abs(out - ref)))
    assert jnp.allclose(out, ref, atol=5e-3, rtol=5e-3), err

    print("KERNEL_OK")
</pallas_src>

<mosaic_0001>
module attributes {stable_mosaic.version = 11 : i64} {
  func.func @mlp_kernel(%arg0: i32, %arg1: memref<128x16xf32, #tpu.memory_space<vmem>>, %arg2: memref<32x16xf32, #tpu.memory_space<vmem>>, %arg3: memref<32x1xf32, #tpu.memory_space<vmem>>, %arg4: memref<32x1xf32, #tpu.memory_space<vmem>>, %arg5: memref<1x1xf32, #tpu.memory_space<smem>>, %arg6: memref<1x1x128xf32, #tpu.memory_space<vmem>>) attributes {dimension_semantics = [#tpu.dimension_semantics<parallel>], iteration_bounds = array<i64: 2>, scalar_prefetch = 0 : i64, scratch_operands = 0 : i64, tpu.core_type = #tpu.core_type<tc>, window_params = [{transform_indices = @transform_0, window_bounds = array<i64: 128, 16>}, {pipeline_mode = #tpu.pipeline_mode<synchronous>, transform_indices = @transform_1, window_bounds = array<i64: 32, 16>}, {pipeline_mode = #tpu.pipeline_mode<synchronous>, transform_indices = @transform_2, window_bounds = array<i64: 32, 1>}, {pipeline_mode = #tpu.pipeline_mode<synchronous>, transform_indices = @transform_3, window_bounds = array<i64: 32, 1>}, {transform_indices = @transform_4, window_bounds = array<i64: 1, 1>}, {transform_indices = @transform_5, window_bounds = array<i64: 1, 1, 128>}]} {
    %c0 = arith.constant 0 : index
    %c0_0 = arith.constant 0 : index
    %0 = vector.load %arg2[%c0, %c0_0] : memref<32x16xf32, #tpu.memory_space<vmem>>, vector<32x16xf32>
    %c0_1 = arith.constant 0 : index
    %c0_2 = arith.constant 0 : index
    %1 = vector.load %arg1[%c0_1, %c0_2] : memref<128x16xf32, #tpu.memory_space<vmem>>, vector<128x16xf32>
    %cst = arith.constant dense<0.000000e+00> : vector<32x128xf32>
    %2 = tpu.matmul %0, %1, %cst {dimension_numbers = #tpu.dot_dimension_numbers<[1], [1], [0], [0], [0, 0, 1, 0], [], []>} : vector<32x16xf32>, vector<128x16xf32>, vector<32x128xf32> -> vector<32x128xf32>
    %c0_3 = arith.constant 0 : index
    %c0_4 = arith.constant 0 : index
    %3 = vector.load %arg3[%c0_3, %c0_4] : memref<32x1xf32, #tpu.memory_space<vmem>>, vector<32x1xf32>
    %4 = vector.broadcast %3 : vector<32x1xf32> to vector<32x128xf32>
    %5 = arith.addf %2, %4 : vector<32x128xf32>
    %6 = math.tanh %5 : vector<32x128xf32>
    %c0_5 = arith.constant 0 : index
    %c0_6 = arith.constant 0 : index
    %7 = vector.load %arg4[%c0_5, %c0_6] : memref<32x1xf32, #tpu.memory_space<vmem>>, vector<32x1xf32>
    %8 = vector.broadcast %7 : vector<32x1xf32> to vector<32x128xf32>
    %9 = arith.mulf %6, %8 : vector<32x128xf32>
    %cst_7 = arith.constant dense<0.000000e+00> : vector<128xf32>
    %10 = vector.multi_reduction <add>, %9, %cst_7 [0] : vector<32x128xf32> to vector<128xf32>
    %11 = vector.shape_cast %10 : vector<128xf32> to vector<1x128xf32>
    %c0_8 = arith.constant 0 : index
    %c0_9 = arith.constant 0 : index
    %12 = memref.load %arg5[%c0_8, %c0_9] : memref<1x1xf32, #tpu.memory_space<smem>>
    %13 = vector.broadcast %12 : f32 to vector<1x128xf32>
    %14 = arith.addf %11, %13 : vector<1x128xf32>
    %15 = arith.negf %14 : vector<1x128xf32>
    %16 = math.exp %15 : vector<1x128xf32>
    %cst_10 = arith.constant 1.000000e+00 : f32
    %17 = vector.broadcast %cst_10 : f32 to vector<1x128xf32>
    %18 = arith.addf %17, %16 : vector<1x128xf32>
    %19 = arith.divf %17, %18 : vector<1x128xf32>
    %c0_11 = arith.constant 0 : index
    %c0_12 = arith.constant 0 : index
    %c0_13 = arith.constant 0 : index
    %20 = vector.load %arg6[%c0_11, %c0_12, %c0_13] : memref<1x1x128xf32, #tpu.memory_space<vmem>>, vector<1x1x128xf32>
    %21 = vector.shape_cast %20 : vector<1x1x128xf32> to vector<1x128xf32>
    %22 = vector.shape_cast %19 : vector<1x128xf32> to vector<1x1x128xf32>
    tpu.vector_store %arg6[%c0_11, %c0_12, %c0_13], %22 {strides = array<i32>} : memref<1x1x128xf32, #tpu.memory_space<vmem>>, vector<1x1x128xf32>,
    return
  }
  func.func @transform_0(%arg0: i32) -> (i32, i32) {
    %c0_i32 = arith.constant 0 : i32
    %c0_i32_0 = arith.constant 0 : i32
    return %arg0, %c0_i32 : i32, i32
  }
  func.func @transform_1(%arg0: i32) -> (i32, i32) {
    %c0_i32 = arith.constant 0 : i32
    %c0_i32_0 = arith.constant 0 : i32
    %c0_i32_1 = arith.constant 0 : i32
    return %c0_i32, %c0_i32_0 : i32, i32
  }
  func.func @transform_2(%arg0: i32) -> (i32, i32) {
    %c0_i32 = arith.constant 0 : i32
    %c0_i32_0 = arith.constant 0 : i32
    %c0_i32_1 = arith.constant 0 : i32
    return %c0_i32, %c0_i32_0 : i32, i32
  }
  func.func @transform_3(%arg0: i32) -> (i32, i32) {
    %c0_i32 = arith.constant 0 : i32
    %c0_i32_0 = arith.constant 0 : i32
    %c0_i32_1 = arith.constant 0 : i32
    return %c0_i32, %c0_i32_0 : i32, i32
  }
  func.func @transform_4(%arg0: i32) -> (i32, i32) {
    %c0_i32 = arith.constant 0 : i32
    %c0_i32_0 = arith.constant 0 : i32
    %c0_i32_1 = arith.constant 0 : i32
    return %c0_i32, %c0_i32_0 : i32, i32
  }
  func.func @transform_5(%arg0: i32) -> (i32, i32, i32) {
    %c0_i32 = arith.constant 0 : i32
    %c0_i32_0 = arith.constant 0 : i32
    %c0_i32_1 = arith.constant 0 : i32
    return %arg0, %c0_i32, %c0_i32_0 : i32, i32, i32
  }
}

</mosaic_0001>

<llo_original>
// kernel: tpu_custom_call.1
$region0: #{tpu_custom_call.1}
  #allocation0 [shape = 'u32[]', space=smem, size = 0x4, offset = 0x4, fixed_abs, tag = 'smem constant byte address 0x4 - core index']
  #allocation1 [shape = 'u32[144,128]{1,0:T(1,128)}', space=vmem, size = 0x12000, scoped, tag = 'internal scratch']
  #allocation2 [shape = 'f32[1,1]{1,0:T(1,128)S(6)}', space=smem, size = 0x200, scoped, tag = 'scoped memory for tpu_custom_call.1']
  %s0 = inlined_call_operand.vmem [shape: f32[200,16], index: 0, kind: input, shape index: {}]
  %s1 = inlined_call_operand.vmem [shape: f32[32,16], index: 1, kind: input, shape index: {}]
  %s2 = inlined_call_operand.vmem [shape: f32[32,1], index: 2, kind: input, shape index: {}]
  %s3 = inlined_call_operand.vmem [shape: f32[32,1], index: 3, kind: input, shape index: {}]
  %s4 = inlined_call_operand.<no memory space> [shape: f32[1,1], index: 4, kind: input, shape index: {}]
  %s5 = inlined_call_operand.hbm [shape: f32[2,1,128], index: 5, kind: output, shape index: {}]
  %s6 = sld [smem:[#allocation0]]
  $region53: #{tpu_custom_call.1} parent=0
    _
  %s8 = ssub.s32 1, %s6
  %s9 = scalar_select 0, %s8, %s6
  %10 = sst [smem:[#allocation2]] %s4
  $region1: #{tpu_custom_call.1} parent=0
    #allocation3 [shape = 'u8[1024]{0}', space=vmem, size = 0x400, scoped, tag = 'output window, operand 0']
    #allocation4 [shape = 's32[2]{0}', space=sflag, size = 0x8, scoped, tag = 'scoped memory for tpu_custom_call.1']
    %11 = vsyncpa [#allocation4], 0
    %s12 = scalar_lea.sflag [#allocation4], 1
    %13 = vsyncpa %s12, 0
    loop: start=0, step=1, limit=4
    $region2: #{tpu_custom_call.1} parent=1 // loop_pre_header
      _
    $region3: #{tpu_custom_call.1} parent=1 // loop_header
      %s15 = sphi 0, %s19
      %p16 = scmp.ge.s32.totalorder %s15, 4
      %s25 = sphi 0, %s27
      %s28 = sphi 0, %s25
      %s29 = sphi 0, %s28
      %s45 = sphi 0, %s29
      %s49 = sphi 0, %s49
      %s51 = sphi 0, %s49
      %s52 = sphi 0, %s51
      %s66 = sphi 0, %s52
      %s70 = sphi 0, %s70
      %s72 = sphi 0, %s70
      %s73 = sphi 0, %s72
      %s87 = sphi 0, %s73
      %s91 = sphi 0, %s91
      %s93 = sphi 0, %s91
      %s94 = sphi 0, %s93
      %s108 = sphi 0, %s94
      %s112 = sphi 0, %s112
      %s114 = sphi 0, %s112
      %s115 = sphi 0, %s114
      %s129 = sphi 0, %s115
      %s135 = sphi 0, %s137
      %s138 = sphi 0, %s135
      %s139 = sphi 0, %s138
      %s155 = sphi 0, %s139
    $region4: #{tpu_custom_call.1} parent=1 // loop_header_branch
      %18 = sbr.rel (%p16) target = $region8
    $region5: #{tpu_custom_call.1} parent=1 // loop_body
      %s20 = ssub.s32 %s15, 1
      %s21 = ssub.s32 %s15, 2
      %s22 = sadd.s32 %s15, 1
      %s23 = ssub.s32 %s15, %s22
      %p24 = scmp.eq.s32.totalorder %s23, 0
      %s26 = sadd.s32 %s25, 1
      %s27 = scalar_select %p24, %s25, %s26
      %p30 = pneg %p24
      %p31 = scmp.eq.s32.totalorder %s15, 1
      %p32 = por %p30, %p31
      %p33 = scmp.ne.s32.totalorder %s25, %s28
      %p34 = scmp.eq.s32.totalorder %s15, 0
      %p35 = por %p33, %p34
      %p36 = scmp.ne.s32.totalorder %s25, %s28
      %p37 = scmp.eq.s32.totalorder %s20, 1
      %p38 = por %p36, %p37
      %p39 = scmp.ne.s32.totalorder %s28, %s29
      %p40 = scmp.eq.s32.totalorder %s20, 0
      %p41 = por %p39, %p40
      %p42 = scmp.ne.s32.totalorder %s28, %s29
      %p43 = scmp.eq.s32.totalorder %s21, 1
      %p44 = por %p42, %p43
      %p46 = scmp.ne.s32.totalorder %s29, %s45
      %p47 = scmp.eq.s32.totalorder %s21, 0
      %p48 = por %p46, %p47
      %s50 = sadd.s32 %s49, 1
      %p53 = scmp.eq.s32.totalorder %s15, 1
      %p54 = scmp.ne.s32.totalorder %s49, %s51
      %p55 = scmp.eq.s32.totalorder %s15, 0
      %p56 = por %p54, %p55
      %p57 = scmp.ne.s32.totalorder %s49, %s51
      %p58 = scmp.eq.s32.totalorder %s20, 1
      %p59 = por %p57, %p58
      %p60 = scmp.ne.s32.totalorder %s51, %s52
      %p61 = scmp.eq.s32.totalorder %s20, 0
      %p62 = por %p60, %p61
      %p63 = scmp.ne.s32.totalorder %s51, %s52
      %p64 = scmp.eq.s32.totalorder %s21, 1
      %p65 = por %p63, %p64
      %p67 = scmp.ne.s32.totalorder %s52, %s66
      %p68 = scmp.eq.s32.totalorder %s21, 0
      %p69 = por %p67, %p68
      %s71 = sadd.s32 %s70, 1
      %p74 = scmp.eq.s32.totalorder %s15, 1
      %p75 = scmp.ne.s32.totalorder %s70, %s72
      %p76 = scmp.eq.s32.totalorder %s15, 0
      %p77 = por %p75, %p76
      %p78 = scmp.ne.s32.totalorder %s70, %s72
      %p79 = scmp.eq.s32.totalorder %s20, 1
      %p80 = por %p78, %p79
      %p81 = scmp.ne.s32.totalorder %s72, %s73
      %p82 = scmp.eq.s32.totalorder %s20, 0
      %p83 = por %p81, %p82
      %p84 = scmp.ne.s32.totalorder %s72, %s73
      %p85 = scmp.eq.s32.totalorder %s21, 1
      %p86 = por %p84, %p85
      %p88 = scmp.ne.s32.totalorder %s73, %s87
      %p89 = scmp.eq.s32.totalorder %s21, 0
      %p90 = por %p88, %p89
      %s92 = sadd.s32 %s91, 1
      %p95 = scmp.eq.s32.totalorder %s15, 1
      %p96 = scmp.ne.s32.totalorder %s91, %s93
      %p97 = scmp.eq.s32.totalorder %s15, 0
      %p98 = por %p96, %p97
      %p99 = scmp.ne.s32.totalorder %s91, %s93
      %p100 = scmp.eq.s32.totalorder %s20, 1
      %p101 = por %p99, %p100
      %p102 = scmp.ne.s32.totalorder %s93, %s94
      %p103 = scmp.eq.s32.totalorder %s20, 0
      %p104 = por %p102, %p103
      %p105 = scmp.ne.s32.totalorder %s93, %s94
      %p106 = scmp.eq.s32.totalorder %s21, 1
      %p107 = por %p105, %p106
      %p109 = scmp.ne.s32.totalorder %s94, %s108
      %p110 = scmp.eq.s32.totalorder %s21, 0
      %p111 = por %p109, %p110
      %s113 = sadd.s32 %s112, 1
      %p116 = scmp.eq.s32.totalorder %s15, 1
      %p117 = scmp.ne.s32.totalorder %s112, %s114
      %p118 = scmp.eq.s32.totalorder %s15, 0
      %p119 = por %p117, %p118
      %p120 = scmp.ne.s32.totalorder %s112, %s114
      %p121 = scmp.eq.s32.totalorder %s20, 1
      %p122 = por %p120, %p121
      %p123 = scmp.ne.s32.totalorder %s114, %s115
      %p124 = scmp.eq.s32.totalorder %s20, 0
      %p125 = por %p123, %p124
      %p126 = scmp.ne.s32.totalorder %s114, %s115
      %p127 = scmp.eq.s32.totalorder %s21, 1
      %p128 = por %p126, %p127
      %p130 = scmp.ne.s32.totalorder %s115, %s129
      %p131 = scmp.eq.s32.totalorder %s21, 0
      %p132 = por %p130, %p131
      %s133 = ssub.s32 %s15, %s22
      %p134 = scmp.eq.s32.totalorder %s133, 0
      %s136 = sadd.s32 %s135, 1
      %s137 = scalar_select %p134, %s135, %s136
      %p140 = pneg %p134
      %p141 = scmp.eq.s32.totalorder %s15, 1
      %p142 = por %p140, %p141
      %p143 = scmp.ne.s32.totalorder %s135, %s138
      %p144 = scmp.eq.s32.totalorder %s15, 0
      %p145 = por %p143, %p144
      %p146 = scmp.ne.s32.totalorder %s135, %s138
      %p147 = scmp.eq.s32.totalorder %s20, 1
      %p148 = por %p146, %p147
      %p149 = scmp.ne.s32.totalorder %s138, %s139
      %p150 = scmp.eq.s32.totalorder %s20, 0
      %p151 = por %p149, %p150
      %p152 = scmp.ne.s32.totalorder %s138, %s139
      %p153 = scmp.eq.s32.totalorder %s21, 1
      %p154 = por %p152, %p153
      %p156 = scmp.ne.s32.totalorder %s139, %s155
      %p157 = scmp.eq.s32.totalorder %s21, 0
      %p158 = por %p156, %p157
      %p159 = scmp.le.s32.totalorder 1, %s15
      %p160 = scmp.lt.s32.totalorder %s15, 3
      %p161 = pnand %p159, %p160
      %p162 = pneg %p161
      // Predicated region
      $region9: #{tpu_custom_call.1} parent=5 // pred_check
        _
      $region10: #{tpu_custom_call.1} parent=5 // pred_check_branch
        %164 = sbr.rel (%p161) target = $region12
      $region11: #{tpu_custom_call.1} parent=5 // pred_region
        %s165 = ssub.s32 %s15, 1
        // Predicated region
        $region13: #{tpu_custom_call.1} parent=11 // pred_check
          %p166 = pneg %p62
        $region14: #{tpu_custom_call.1} parent=11 // pred_check_branch
          %168 = sbr.rel (%p166) target = $region16
        $region15: #{tpu_custom_call.1} parent=11 // pred_region
          _
        $region16: #{tpu_custom_call.1} parent=11 // pred_fallthru
          _
        // Predicated region
        $region17: #{tpu_custom_call.1} parent=11 // pred_check
          %p169 = pneg %p83
        $region18: #{tpu_custom_call.1} parent=11 // pred_check_branch
          %171 = sbr.rel (%p169) target = $region20
        $region19: #{tpu_custom_call.1} parent=11 // pred_region
          _
        $region20: #{tpu_custom_call.1} parent=11 // pred_fallthru
          _
        // Predicated region
        $region21: #{tpu_custom_call.1} parent=11 // pred_check
          %p172 = pneg %p104
        $region22: #{tpu_custom_call.1} parent=11 // pred_check_branch
          %174 = sbr.rel (%p172) target = $region24
        $region23: #{tpu_custom_call.1} parent=11 // pred_region
          _
        $region24: #{tpu_custom_call.1} parent=11 // pred_fallthru
          _
        // Predicated region
        $region25: #{tpu_custom_call.1} parent=11 // pred_check
          %p175 = pneg %p125
        $region26: #{tpu_custom_call.1} parent=11 // pred_check_branch
          %177 = sbr.rel (%p175) target = $region28
        $region27: #{tpu_custom_call.1} parent=11 // pred_region
          _
        $region28: #{tpu_custom_call.1} parent=11 // pred_fallthru
          _
      $region12: #{tpu_custom_call.1} parent=5 // pred_fallthru
        _
      %p178 = scmp.lt.s32.totalorder %s15, 2
      // Predicated region
      $region29: #{tpu_custom_call.1} parent=5 // pred_check
        %p179 = pneg %p178
      $region30: #{tpu_custom_call.1} parent=5 // pred_check_branch
        %181 = sbr.rel (%p179) target = $region32
      $region31: #{tpu_custom_call.1} parent=5 // pred_region
        // Predicated region
        $region33: #{tpu_custom_call.1} parent=31 // pred_check
          %p182 = pneg %p35
        $region34: #{tpu_custom_call.1} parent=31 // pred_check_branch
          %184 = sbr.rel (%p182) target = $region36
        $region35: #{tpu_custom_call.1} parent=31 // pred_region
          %s185 = smul.u32 16, %s15
          %s186 = ssub.s32 25, %s185
          %p187 = scmp.lt.s32.totalorder %s186, 16
          %s188 = scalar_select %p187, %s186, 16
          %s189 = smul.u32 128, %s188
          %p190 = scmp.lt.s32.totalorder %s185, 24
          %s191 = scalar_select %p190, %s185, 24
          %s192 = smul.addr %s191, 8
          %s193 = scalar_lea.vmem %s0, %s192
          %s194 = smul.u32 16, %s15
          %s195 = ssub.s32 25, %s194
          %p196 = scmp.lt.s32.totalorder %s195, 16
          %s197 = scalar_select %p196, %s195, 16
          %s198 = smul.u32 128, %s197
        $region36: #{tpu_custom_call.1} parent=31 // pred_fallthru
          _
      $region32: #{tpu_custom_call.1} parent=5 // pred_fallthru
        _
      %p199 = scmp.le.s32.totalorder 1, %s15
      %p200 = scmp.lt.s32.totalorder %s15, 3
      %p201 = pnand %p199, %p200
      %p202 = pneg %p201
      // Predicated region
      $region37: #{tpu_custom_call.1} parent=5 // pred_check
        _
      $region38: #{tpu_custom_call.1} parent=5 // pred_check_branch
        %204 = sbr.rel (%p201) target = $region40
      $region39: #{tpu_custom_call.1} parent=5 // pred_region
        %s205 = ssub.s32 %s15, 1
        %s206 = smul.u32 16, %s20
        %s207 = ssub.s32 25, %s206
        %p208 = scmp.lt.s32.totalorder %s207, 16
        %s209 = scalar_select %p208, %s207, 16
        %s210 = smul.u32 128, %s209
        %p211 = scmp.lt.s32.totalorder %s206, 24
        %s212 = scalar_select %p211, %s206, 24
        %s213 = smul.addr %s212, 8
        %s214 = scalar_lea.vmem %s0, %s213
        %p215 = pneg %p41
        %p216 = pneg %p38
        %p217 = pneg %p62
        %p218 = pneg %p59
        %p219 = pneg %p83
        %p220 = pneg %p80
        %p221 = pneg %p104
        %p222 = pneg %p101
        %p223 = pneg %p125
        %p224 = pneg %p122
        %p225 = pneg %p151
        %p226 = pneg %p148
        %s227 = sand.u32 %s138, 1
        %s228 = scalar_lea.sflag [#allocation4], %s227
        %s229 = sand.u32 %s138, 1
        %s230 = scalar_lea.vmem [#allocation3], %s229
        %s231 = smul.u32 16, %s20
        %s232 = ssub.s32 25, %s231
        %p233 = scmp.lt.s32.totalorder %s232, 16
        %s234 = scalar_select %p233, %s232, 16
        %s235 = smul.u32 128, %s234
        %p236 = scmp.lt.s32.totalorder %s231, 24
        %s237 = scalar_select %p236, %s231, 24
        %s238 = smul.addr %s237, 8
        %s239 = scalar_lea.vmem %s0, %s238
        %s240 = smul.u32 16, %s20
        %s241 = ssub.s32 25, %s240
        %p242 = scmp.lt.s32.totalorder %s241, 16
        %s243 = scalar_select %p242, %s241, 16
        %s244 = smul.u32 128, %s243
        %v245 = vld [vmem:[%s1] sm:$0xff]
        %v246 = vld [vmem:[%s1 + $0x8] sm:$0xff]
        %v247 = vld [vmem:[%s1 + $0x10] sm:$0xff]
        %v248 = vld [vmem:[%s1 + $0x18] sm:$0xff]
        %v249 = vld [vmem:[%s239] sm:$0xff]
        %v250 = vld [vmem:[%s239 + $0x8] sm:$0xff]
        %v251 = vld [vmem:[%s239 + $0x10] sm:$0xff]
        %v252 = vld [vmem:[%s239 + $0x18] sm:$0xff]
        %v253 = vld [vmem:[%s239 + $0x20] sm:$0xff]
        %v254 = vld [vmem:[%s239 + $0x28] sm:$0xff]
        %v255 = vld [vmem:[%s239 + $0x30] sm:$0xff]
        %v256 = vld [vmem:[%s239 + $0x38] sm:$0xff]
        %v257 = vld [vmem:[%s239 + $0x40] sm:$0xff]
        %v258 = vld [vmem:[%s239 + $0x48] sm:$0xff]
        %v259 = vld [vmem:[%s239 + $0x50] sm:$0xff]
        %v260 = vld [vmem:[%s239 + $0x58] sm:$0xff]
        %v261 = vld [vmem:[%s239 + $0x60] sm:$0xff]
        %v262 = vld [vmem:[%s239 + $0x68] sm:$0xff]
        %v263 = vld [vmem:[%s239 + $0x70] sm:$0xff]
        %v264 = vld [vmem:[%s239 + $0x78] sm:$0xff]
        %v265 = vld [vmem:[%s2] sm:$0xff]
        %v266 = vld [vmem:[%s2 + $0x8] sm:$0xff]
        %v267 = vld [vmem:[%s2 + $0x10] sm:$0xff]
        %v268 = vld [vmem:[%s2 + $0x18] sm:$0xff]
        %270 = vset.pattern.permute.xlu0 0
        %271 = vperm.xlu0 %270, %v265
        %v272 = vpop.permute.xlu0 %271
        %275 = vset.pattern.permute.xlu0 0
        %276 = vperm.xlu0 %275, %v266
        %v277 = vpop.permute.xlu0 %276
        %280 = vset.pattern.permute.xlu0 0
        %281 = vperm.xlu0 %280, %v267
        %v282 = vpop.permute.xlu0 %281
        %285 = vset.pattern.permute.xlu0 0
        %286 = vperm.xlu0 %285, %v268
        %v287 = vpop.permute.xlu0 %286
        %vm289 = vcmask 130048
        %v291 = vsel %vm289, %v245, 0
        %v294 = vsel %vm289, %v246, 0
        %v297 = vsel %vm289, %v247, 0
        %v300 = vsel %vm289, %v248, 0
        %v303 = vsel %vm289, %v249, 0
        %v306 = vsel %vm289, %v250, 0
        %v309 = vsel %vm289, %v251, 0
        %v312 = vsel %vm289, %v252, 0
        %v315 = vsel %vm289, %v253, 0
        %v318 = vsel %vm289, %v254, 0
        %v321 = vsel %vm289, %v255, 0
        %v324 = vsel %vm289, %v256, 0
        %v327 = vsel %vm289, %v257, 0
        %v330 = vsel %vm289, %v258, 0
        %v333 = vsel %vm289, %v259, 0
        %v336 = vsel %vm289, %v260, 0
        %v339 = vsel %vm289, %v261, 0
        %v342 = vsel %vm289, %v262, 0
        %v345 = vsel %vm289, %v263, 0
        %v348 = vsel %vm289, %v264, 0
        %350 = vmatprep.subr.mxu0 0.0
        %351 = vmatpush1.xpose.msra.mxu0 %v303
        %352 = vmatprep.subr.mxu0 0.0
        %353 = vmatpush1.xpose.msra.mxu0 %v306
        %354 = vmatprep.subr.mxu0 0.0
        %355 = vmatpush1.xpose.msra.mxu0 %v309
        %356 = vmatprep.subr.mxu0 0.0
        %357 = vmatpush1.xpose.msra.mxu0 %v312
        %358 = vmatprep.subr.mxu0 0.0
        %359 = vmatpush1.xpose.msra.mxu0 %v315
        %360 = vmatprep.subr.mxu0 0.0
        %361 = vmatpush1.xpose.msra.mxu0 %v318
        %362 = vmatprep.subr.mxu0 0.0
        %363 = vmatpush1.xpose.msra.mxu0 %v321
        %364 = vmatprep.subr.mxu0 0.0
        %365 = vmatpush1.xpose.msra.mxu0 %v324
        %366 = vmatprep.subr.mxu0 0.0
        %367 = vmatpush1.xpose.msra.mxu0 %v327
        %368 = vmatprep.subr.mxu0 0.0
        %369 = vmatpush1.xpose.msra.mxu0 %v330
        %370 = vmatprep.subr.mxu0 0.0
        %371 = vmatpush1.xpose.msra.mxu0 %v333
        %372 = vmatprep.subr.mxu0 0.0
        %373 = vmatpush1.xpose.msra.mxu0 %v336
        %374 = vmatprep.subr.mxu0 0.0
        %375 = vmatpush1.xpose.msra.mxu0 %v339
        %376 = vmatprep.subr.mxu0 0.0
        %377 = vmatpush1.xpose.msra.mxu0 %v342
        %378 = vmatprep.subr.mxu0 0.0
        %379 = vmatpush1.xpose.msra.mxu0 %v345
        %380 = vmatprep.subr.mxu0 0.0
        %381 = vmatpush1.xpose.msra.mxu0 %v348
        %382 = vmatprep.subr.mxu0 0.0
        %383 = vmatpush1.xpose.msra.mxu0 0.0
        %384 = vmatprep.subr.mxu0 0.0
        %385 = vmatpush1.xpose.msra.mxu0 0.0
        %386 = vmatprep.subr.mxu0 0.0
        %387 = vmatpush1.xpose.msra.mxu0 0.0
        %388 = vmatprep.subr.mxu0 0.0
        %389 = vmatpush1.xpose.msra.mxu0 0.0
        %390 = vmatprep.subr.mxu0 0.0
        %391 = vmatpush1.xpose.msra.mxu0 0.0
        %392 = vmatprep.subr.mxu0 0.0
        %393 = vmatpush1.xpose.msra.mxu0 0.0
        %394 = vmatprep.subr.mxu0 0.0
        %395 = vmatpush1.xpose.msra.mxu0 0.0
        %396 = vmatprep.subr.mxu0 0.0
        %397 = vmatpush1.xpose.msra.mxu0 0.0
        %398 = vmatprep.subr.mxu0 0.0
        %399 = vmatpush1.xpose.msra.mxu0 0.0
        %400 = vmatprep.subr.mxu0 0.0
        %401 = vmatpush1.xpose.msra.mxu0 0.0
        %402 = vmatprep.subr.mxu0 0.0
        %403 = vmatpush1.xpose.msra.mxu0 0.0
        %404 = vmatprep.subr.mxu0 0.0
        %405 = vmatpush1.xpose.msra.mxu0 0.0
        %406 = vmatprep.subr.mxu0 0.0
        %407 = vmatpush1.xpose.msra.mxu0 0.0
        %408 = vmatprep.subr.mxu0 0.0
        %409 = vmatpush1.xpose.msra.mxu0 0.0
        %410 = vmatprep.subr.mxu0 0.0
        %411 = vmatpush1.xpose.msra.mxu0 0.0
        %412 = vmatprep.subr.mxu0 0.0
        %413 = vmatpush1.xpose.msra.mxu0 0.0
        %414 = vmatprep.mubr.f32.mxu0 0.0
        %415 = vmatmul.mubr.f32.gmra.mrb[0].mxu0 %v291
        %v416 = vpop.f32.mrb[0].mxu0
        %v417 = vadd.f32 %v272, %v416
        %v418 = vpop.f32.mrb[0].mxu0
        %419 = vmatprep.mubr.f32.mxu0 0.0
        %420 = vmatmul.mubr.f32.gmra.mrb[0].mxu0 %v294
        %v421 = vpop.f32.mrb[0].mxu0
        %v422 = vadd.f32 %v277, %v421
        %v423 = vpop.f32.mrb[0].mxu0
        %424 = vmatprep.mubr.f32.mxu0 0.0
        %425 = vmatmul.mubr.f32.gmra.mrb[0].mxu0 %v297
        %v426 = vpop.f32.mrb[0].mxu0
        %v427 = vadd.f32 %v282, %v426
        %v428 = vpop.f32.mrb[0].mxu0
        %429 = vmatprep.mubr.f32.mxu0 0.0
        %430 = vmatmul.mubr.f32.gmra.mrb[0].mxu0 %v300
        %v431 = vpop.f32.mrb[0].mxu0
        %v432 = vadd.f32 %v287, %v431
        %v433 = vpop.f32.mrb[0].mxu0
        %434 = vdwg.mxu0
        %v435 = vtanh.pop %v417
        %v436 = vtanh.pop %v422
        %v437 = vtanh.pop %v427
        %v438 = vtanh.pop %v432
        %v439 = vld [vmem:[%s3] sm:$0xff]
        %v440 = vld [vmem:[%s3 + $0x8] sm:$0xff]
        %v441 = vld [vmem:[%s3 + $0x10] sm:$0xff]
        %v442 = vld [vmem:[%s3 + $0x18] sm:$0xff]
        %444 = vset.pattern.permute.xlu0 0
        %445 = vperm.xlu0 %444, %v439
        %v446 = vpop.permute.xlu0 %445
        %449 = vset.pattern.permute.xlu0 0
        %450 = vperm.xlu0 %449, %v440
        %v451 = vpop.permute.xlu0 %450
        %454 = vset.pattern.permute.xlu0 0
        %455 = vperm.xlu0 %454, %v441
        %v456 = vpop.permute.xlu0 %455
        %459 = vset.pattern.permute.xlu0 0
        %460 = vperm.xlu0 %459, %v442
        %v461 = vpop.permute.xlu0 %460
        %v463 = vmul.f32 %v435, %v446
        %v464 = vmul.f32 %v436, %v451
        %v465 = vmul.f32 %v437, %v456
        %v466 = vmul.f32 %v438, %v461
        %v467 = vadd.f32 %v463, %v464
        %v468 = vadd.f32 %v467, %v465
        %v469 = vadd.f32 %v468, %v466
        %v470 = vrot.slane %v469, 4
        %v471 = vadd.f32 %v469, %v470
        %v472 = vrot.slane %v471, 2
        %v473 = vadd.f32 %v471, %v472
        %v474 = vrot.slane %v473, 1
        %v475 = vadd.f32 %v473, %v474
        %s476 = sld [smem:[#allocation2]]
        %v477 = vstv %s476
        %v478 = vadd.f32 %v475, %v477
        %v479 = vxor.u32 %v478, 2147483648
        %v480 = vmul.f32 %v479, 1.442695
        %v481 = vpow.pop %v480
        %v482 = vadd.f32 %v481, 1.0
        %v483 = vrcp.pop %v482
        %v484 = vmul.f32 1.0, %v483
        %485 = vst [vmem:[%s230] sm:$0x1] %v484
        %s486 = sand.u32 %s138, 1
        %s487 = scalar_lea.sflag [#allocation4], %s486
        %s488 = sand.u32 %s138, 1
        %s489 = scalar_lea.vmem [#allocation3], %s488
        // Predicated region
        $region41: #{tpu_custom_call.1} parent=39 // pred_check
          %p490 = pneg %p148
        $region42: #{tpu_custom_call.1} parent=39 // pred_check_branch
          %492 = sbr.rel (%p490) target = $region44
        $region43: #{tpu_custom_call.1} parent=39 // pred_region
          %s494 = ssub.s32 16, 16
          %495 = vsyncadd %s487, %s494
          %s496 = smul.addr %s20, 16
          %s497 = scalar_lea.hbm %s5, %s496
          %s499 = sshll.u32 %s489, 4
          %s500 = int_to_ptr.vmem [resolvable:$true] %s499
          %502 = dma.vmem_to_hbm [thread:$0]  %s500, 16, %s497, %s487
        $region44: #{tpu_custom_call.1} parent=39 // pred_fallthru
          _
      $region40: #{tpu_custom_call.1} parent=5 // pred_fallthru
        _
      %p503 = scmp.le.s32.totalorder 2, %s15
      // Predicated region
      $region45: #{tpu_custom_call.1} parent=5 // pred_check
        %p504 = pneg %p503
      $region46: #{tpu_custom_call.1} parent=5 // pred_check_branch
        %506 = sbr.rel (%p504) target = $region48
      $region47: #{tpu_custom_call.1} parent=5 // pred_region
        %s507 = ssub.s32 %s15, 2
        // Predicated region
        $region49: #{tpu_custom_call.1} parent=47 // pred_check
          %p508 = pneg %p154
        $region50: #{tpu_custom_call.1} parent=47 // pred_check_branch
          %510 = sbr.rel (%p508) target = $region52
        $region51: #{tpu_custom_call.1} parent=47 // pred_region
          %s511 = sand.u32 %s139, 1
          %s512 = scalar_lea.sflag [#allocation4], %s511
          %s513 = sand.u32 %s139, 1
          %s514 = scalar_lea.vmem [#allocation3], %s513
          %515 = dma.done %s512, 16
        $region52: #{tpu_custom_call.1} parent=47 // pred_fallthru
          _
      $region48: #{tpu_custom_call.1} parent=5 // pred_fallthru
        _
    $region6: #{tpu_custom_call.1} parent=1 // loop_footer
      %s19 = sadd.s32 1, %s15
    $region7: #{tpu_custom_call.1} parent=1 // loop_footer_branch
      %14 = sbr.rel target = $region3
    $region8: #{tpu_custom_call.1} parent=1 // loop_exit
      _
    %516 = vsyncpa [#allocation4], 1
    %s517 = scalar_lea.sflag [#allocation4], 1
    %518 = vsyncpa %s517, 1

</llo_original>
